<compile_context>
chip_gen: v6e
topology: v6e:2x2x1
jax: 0.10.0
libtpu: 0.0.40
codegen_flags: <defaults>
</compile_context>

<pallas_src>
import jax
import jax.numpy as jnp
from jax.experimental import pallas as pl
from jax.experimental.pallas import tpu as pltpu

EPS = 1e-5


def _round_up(n, m):
    return (n + m - 1) // m * m


def _vmem_capacity_bytes():
    """Physical VMEM per TensorCore; conservative 64 MiB (v7x-sized) fallback."""
    try:
        cap = getattr(pltpu.get_tpu_info(), "vmem_capacity_bytes", None)
        if cap:
            return int(cap)
    except Exception:  # capability probe only; never mask kernel errors
        pass
    return 64 * 1024 * 1024


# --------------------------------------------------------------------------- kernels
def sublayer2_fused_kernel(g_ref, x_ref, w1_ref, b1_ref, w2_ref, b2_ref, o_ref):
    """Whole inner dim resident: one pass per row tile, no scratch needed."""
    x = x_ref[...].astype(jnp.float32)
    g = g_ref[0, 0]
    # g * rsqrt(max(sum(x^2), eps^2)) == g / max(||x||, eps)  (sqrt is monotone);
    # rsqrt runs on the EUP slot.
    ss = jnp.sum(x * x, axis=-1, keepdims=True)
    xn = x * (g * jax.lax.rsqrt(jnp.maximum(ss, EPS * EPS)))
    h = jnp.dot(xn.astype(w1_ref.dtype), w1_ref[...],
                preferred_element_type=jnp.float32)
    h = jnp.maximum(h + b1_ref[...].astype(jnp.float32), 0.0)
    y = jnp.dot(h.astype(w2_ref.dtype), w2_ref[...],
                preferred_element_type=jnp.float32)
    o_ref[...] = (y + x + b2_ref[...].astype(jnp.float32)).astype(o_ref.dtype)


def sublayer2_split_kernel(g_ref, x_ref, w1_ref, b1_ref, w2_ref, b2_ref, o_ref,
                           xn_ref, acc_ref):
    """Inner dim split across k (reduction axis of the second matmul)."""
    k = pl.program_id(1)

    # ScaleNorm hoisted out of the k loop: computed once per row tile at k==0 into
    # VMEM scratch (already cast to the W1 dtype) and reused for every inner slice.
    @pl.when(k == 0)
    def _():
        x = x_ref[...].astype(jnp.float32)
        g = g_ref[0, 0]
        ss = jnp.sum(x * x, axis=-1, keepdims=True)
        xn_ref[...] = (x * (g * jax.lax.rsqrt(jnp.maximum(ss, EPS * EPS)))
                       ).astype(xn_ref.dtype)

    h = jnp.dot(xn_ref[...], w1_ref[...], preferred_element_type=jnp.float32)
    h = jnp.maximum(h + b1_ref[...].astype(jnp.float32), 0.0)
    part = jnp.dot(h.astype(w2_ref.dtype), w2_ref[...],
                   preferred_element_type=jnp.float32)

    # Write-through accumulator init (no zero-fill + read-modify-write pass).
    @pl.when(k == 0)
    def _():
        acc_ref[...] = part

    @pl.when(k > 0)
    def _():
        acc_ref[...] += part

    @pl.when(k == pl.num_programs(1) - 1)
    def _():
        # prenorm residual + second bias (added exactly once).
        x = x_ref[...].astype(jnp.float32)
        o_ref[...] = (acc_ref[...] + x
                      + b2_ref[...].astype(jnp.float32)).astype(o_ref.dtype)


# --------------------------------------------------------------------------- wrapper
def sublayer2(x, g, w1, b1, w2, b2, *, tile_rows=512, tile_inner=None):
    """x: [R, H] token rows.  Returns x + relu(ScaleNorm(x) @ W1 + b1) @ W2 + b2."""
    R, H = x.shape
    Hw, I = w1.shape
    assert Hw == H and w2.shape == (I, H) and b1.shape == (I,) and b2.shape == (H,)

    # Sublane packing of the activation dtype: 8 rows f32, 16 bf16, 32 int8/fp8.
    row_align = 8 * max(1, 4 // max(1, x.dtype.itemsize))
    Ip_full = _round_up(I, 128)

    cap = _vmem_capacity_bytes()
    budget = (cap * 3) // 4            # ~48 MiB on v7x, ~96 MiB on v5e/v6e

    def vmem_bytes(tr_, ti_, split):
        wbuf = 2 if split else 1       # constant-index weight blocks: single-buffered
        wgt = wbuf * (H * ti_ * w1.dtype.itemsize + ti_ * H * w2.dtype.itemsize)
        io = 2 * 2 * tr_ * H * x.dtype.itemsize       # x + out tiles, double-buffered
        temps = tr_ * ti_ * 4                          # relu intermediate (f32)
        scratch = (tr_ * H * w1.dtype.itemsize + tr_ * H * 4) if split else 0
        bias = wbuf * (ti_ + H) * 4
        return wgt + io + temps + scratch + bias

    def fits(tr_, ti_):
        return vmem_bytes(tr_, ti_, ti_ < Ip_full) <= budget

    # Row tile: large, sublane-aligned, clipped to the padded row count.
    tr = max(row_align, _round_up(min(tile_rows, _round_up(R, row_align)), row_align))
    # Inner tile: keep I unsplit unless explicitly requested / VMEM-bound.
    if tile_inner is None:
        ti = Ip_full
    else:
        ti = max(128, min(_round_up(tile_inner, 128), Ip_full))

    # VMEM-fit search (review order): shrink rows first; split I only as last resort.
    row_floor_hi = min(tr, max(row_align,
                               _round_up(min(128, _round_up(R, row_align)), row_align)))
    while not fits(tr, ti) and tr > row_floor_hi:
        tr = max(row_floor_hi, _round_up(tr // 2, row_align))
    inner_floor_hi = min(512, Ip_full)
    while not fits(tr, ti) and ti > inner_floor_hi:    # keep >=512-wide weight slices
        ti = max(inner_floor_hi, _round_up(ti // 2, 128))
    while not fits(tr, ti) and tr > row_align:
        tr = max(row_align, _round_up(tr // 2, row_align))
    while not fits(tr, ti) and ti > 128:
        ti = max(128, _round_up(ti // 2, 128))

    # Megacore: ensure the "parallel" row axis has >=2 tiles (v7x has 2 TensorCores).
    if _round_up(R, row_align) > row_align:
        tr = min(tr, _round_up(-(-R // 2), row_align))

    Rp = _round_up(R, tr)
    Ip = _round_up(I, ti)
    n_row_tiles = Rp // tr
    n_inner_tiles = Ip // ti

    # Zero-pad instead of asserting divisibility (padded inner columns are zero and
    # contribute nothing; padded output rows are sliced off at the end).
    xp = x if Rp == R else jnp.pad(x, ((0, Rp - R), (0, 0)))
    w1p = w1 if Ip == I else jnp.pad(w1, ((0, 0), (0, Ip - I)))
    b1p = (b1 if Ip == I else jnp.pad(b1, ((0, Ip - I),))).reshape(1, Ip)
    w2p = w2 if Ip == I else jnp.pad(w2, ((0, Ip - I), (0, 0)))
    b2p = b2.reshape(1, H)
    g2 = jnp.asarray(g, jnp.float32).reshape(1, 1)

    cost = pl.CostEstimate(
        flops=int(4 * Rp * H * Ip + 6 * Rp * H),
        transcendentals=int(Rp),
        bytes_accessed=int(H * Ip * w1.dtype.itemsize + Ip * H * w2.dtype.itemsize
                           + 2 * Rp * H * x.dtype.itemsize
                           + (Ip + H) * b1.dtype.itemsize),
    )
    vmem_limit = int(min(budget, max(32 * 1024 * 1024,
                                     2 * vmem_bytes(tr, ti, n_inner_tiles > 1))))

    def call(single_buffer):
        def const_spec(shape, imap):
            # Blocks whose index never changes across the grid need only one buffer.
            if single_buffer:
                return pl.BlockSpec(shape, imap, pipeline_mode=pl.Buffered(1))
            return pl.BlockSpec(shape, imap)

        if n_inner_tiles == 1:
            kernel = sublayer2_fused_kernel
            grid_spec = pltpu.PrefetchScalarGridSpec(
                num_scalar_prefetch=0,
                grid=(n_row_tiles,),
                in_specs=[
                    pl.BlockSpec(memory_space=pltpu.MemorySpace.SMEM),   # g scalar
                    pl.BlockSpec((tr, H), lambda i: (i, 0)),             # x tile
                    const_spec((H, Ip), lambda i: (0, 0)),               # W1 (resident)
                    const_spec((1, Ip), lambda i: (0, 0)),               # b1 (resident)
                    const_spec((Ip, H), lambda i: (0, 0)),               # W2 (resident)
                    const_spec((1, H), lambda i: (0, 0)),                # b2 (resident)
                ],
                out_specs=pl.BlockSpec((tr, H), lambda i: (i, 0)),
                scratch_shapes=[],
            )
            dims = ("parallel",)
        else:
            kernel = sublayer2_split_kernel
            grid_spec = pltpu.PrefetchScalarGridSpec(
                num_scalar_prefetch=0,
                grid=(n_row_tiles, n_inner_tiles),
                in_specs=[
                    pl.BlockSpec(memory_space=pltpu.MemorySpace.SMEM),   # g scalar
                    pl.BlockSpec((tr, H), lambda i, k: (i, 0)),          # x tile
                    pl.BlockSpec((H, ti), lambda i, k: (0, k)),          # W1 slice
                    pl.BlockSpec((1, ti), lambda i, k: (0, k)),          # b1 slice
                    pl.BlockSpec((ti, H), lambda i, k: (k, 0)),          # W2 slice
                    const_spec((1, H), lambda i, k: (0, 0)),             # b2
                ],
                out_specs=pl.BlockSpec((tr, H), lambda i, k: (i, 0)),
                scratch_shapes=[pltpu.VMEM((tr, H), w1.dtype),    # hoisted ScaleNorm(x)
                                pltpu.VMEM((tr, H), jnp.float32)],  # f32 accumulator
            )
            dims = ("parallel", "arbitrary")

        return pl.pallas_call(
            kernel,
            out_shape=jax.ShapeDtypeStruct((Rp, H), x.dtype),
            grid_spec=grid_spec,
            compiler_params=pltpu.CompilerParams(
                dimension_semantics=dims,
                vmem_limit_bytes=vmem_limit,
            ),
            cost_estimate=cost,
        )(g2, xp, w1p, b1p, w2p, b2p)

    try:
        out = call(True)
    except (TypeError, ValueError, NotImplementedError, AttributeError,
            pltpu.LoweringException):
        # Narrow fallback: only for jax builds without pl.Buffered(1) support.
        # Default double-buffering, identical semantics.
        out = call(False)

    return out[:R] if Rp != R else out


def reference(x, g, w1, b1, w2, b2):
    xf = x.astype(jnp.float32)
    norm = jnp.sqrt(jnp.sum(xf * xf, axis=-1, keepdims=True))
    xn = xf * (g / jnp.maximum(norm, EPS))
    h = jnp.maximum(xn @ w1 + b1, 0.0)
    return (h @ w2 + b2) + xf


if __name__ == "__main__":
    # Small shapes consistent with the module: batch=2, seq=8, hidden=128, inner=256.
    B, S, H, I = 2, 8, 128, 256
    key = jax.random.PRNGKey(0)
    k_x, k_w1, k_b1, k_w2, k_b2 = jax.random.split(key, 5)

    x = jax.random.normal(k_x, (B, S, H), dtype=jnp.float32)

    # nn.Linear-style uniform(-1/sqrt(fan_in), 1/sqrt(fan_in)) init.
    lim1 = 1.0 / jnp.sqrt(H)
    lim2 = 1.0 / jnp.sqrt(I)
    w1 = jax.random.uniform(k_w1, (H, I), jnp.float32, -lim1, lim1)
    b1 = jax.random.uniform(k_b1, (I,), jnp.float32, -lim1, lim1)
    w2 = jax.random.uniform(k_w2, (I, H), jnp.float32, -lim2, lim2)
    b2 = jax.random.uniform(k_b2, (H,), jnp.float32, -lim2, lim2)
    g = jnp.array(jnp.sqrt(jnp.float32(H)), dtype=jnp.float32)  # ScaleNorm scale init

    x2 = x.reshape(B * S, H)                          # tokens as rows: [R, H]
    y_ref = reference(x2, g, w1, b1, w2, b2)

    # 1) default tiling: fused path (weights resident, I unsplit, >=2 row tiles)
    y = sublayer2(x2, g, w1, b1, w2, b2)
    jax.block_until_ready(y)
    assert jnp.allclose(y, y_ref, atol=1e-4, rtol=1e-4), "mismatch (fused path)"

    # 2) force the split path: inner-dim reduction, hoisted ScaleNorm + accumulator
    y_mt = sublayer2(x2, g, w1, b1, w2, b2, tile_rows=8, tile_inner=128)
    jax.block_until_ready(y_mt)
    assert jnp.allclose(y_mt, y_ref, atol=1e-4, rtol=1e-4), "mismatch (split path)"

    # 3) ragged row count -> exercises zero-pad tail handling
    y_rag = sublayer2(x2[:13], g, w1, b1, w2, b2)
    jax.block_until_ready(y_rag)
    assert jnp.allclose(y_rag, y_ref[:13], atol=1e-4, rtol=1e-4), "mismatch (ragged)"

    # TODO(synk): Dropout inside PositionwiseFF is train-time only; omitted (identity at eval).
    print("KERNEL_OK")
</pallas_src>

<mosaic_0001>
module attributes {stable_mosaic.version = 11 : i64} {
  func.func @sublayer2_fused_kernel(%arg0: i32, %arg1: memref<1x1xf32, #tpu.memory_space<smem>>, %arg2: memref<8x128xf32, #tpu.memory_space<vmem>>, %arg3: memref<128x256xf32, #tpu.memory_space<vmem>>, %arg4: memref<1x256xf32, #tpu.memory_space<vmem>>, %arg5: memref<256x128xf32, #tpu.memory_space<vmem>>, %arg6: memref<1x128xf32, #tpu.memory_space<vmem>>, %arg7: memref<8x128xf32, #tpu.memory_space<vmem>>) attributes {dimension_semantics = [#tpu.dimension_semantics<parallel>], iteration_bounds = array<i64: 2>, scalar_prefetch = 0 : i64, scratch_operands = 0 : i64, tpu.core_type = #tpu.core_type<tc>, window_params = [{transform_indices = @transform_0, window_bounds = array<i64: 1, 1>}, {transform_indices = @transform_1, window_bounds = array<i64: 8, 128>}, {pipeline_mode = #tpu.pipeline_mode<synchronous>, transform_indices = @transform_2, window_bounds = array<i64: 128, 256>}, {pipeline_mode = #tpu.pipeline_mode<synchronous>, transform_indices = @transform_3, window_bounds = array<i64: 1, 256>}, {pipeline_mode = #tpu.pipeline_mode<synchronous>, transform_indices = @transform_4, window_bounds = array<i64: 256, 128>}, {pipeline_mode = #tpu.pipeline_mode<synchronous>, transform_indices = @transform_5, window_bounds = array<i64: 1, 128>}, {transform_indices = @transform_6, window_bounds = array<i64: 8, 128>}]} {
    %c0 = arith.constant 0 : index
    %c0_0 = arith.constant 0 : index
    %0 = vector.load %arg2[%c0, %c0_0] : memref<8x128xf32, #tpu.memory_space<vmem>>, vector<8x128xf32>
    %c0_1 = arith.constant 0 : index
    %c0_2 = arith.constant 0 : index
    %1 = memref.load %arg1[%c0_1, %c0_2] : memref<1x1xf32, #tpu.memory_space<smem>>
    %2 = arith.mulf %0, %0 : vector<8x128xf32>
    %cst = arith.constant dense<0.000000e+00> : vector<8xf32>
    %3 = vector.multi_reduction <add>, %2, %cst [1] : vector<8x128xf32> to vector<8xf32>
    %4 = vector.shape_cast %3 : vector<8xf32> to vector<8x1xf32>
    %cst_3 = arith.constant 1.000000e-10 : f32
    %5 = vector.broadcast %cst_3 : f32 to vector<8x1xf32>
    %6 = arith.maximumf %4, %5 : vector<8x1xf32>
    %7 = math.rsqrt %6 : vector<8x1xf32>
    %8 = vector.broadcast %1 : f32 to vector<8x1xf32>
    %9 = arith.mulf %8, %7 : vector<8x1xf32>
    %10 = vector.broadcast %9 : vector<8x1xf32> to vector<8x128xf32>
    %11 = arith.mulf %0, %10 : vector<8x128xf32>
    %c0_4 = arith.constant 0 : index
    %c0_5 = arith.constant 0 : index
    %12 = vector.load %arg3[%c0_4, %c0_5] : memref<128x256xf32, #tpu.memory_space<vmem>>, vector<128x256xf32>
    %cst_6 = arith.constant dense<0.000000e+00> : vector<8x256xf32>
    %13 = tpu.matmul %11, %12, %cst_6 {dimension_numbers = #tpu.dot_dimension_numbers<[1], [0], [0], [1], [0, 0, 1, 1], [], []>} : vector<8x128xf32>, vector<128x256xf32>, vector<8x256xf32> -> vector<8x256xf32>
    %c0_7 = arith.constant 0 : index
    %c0_8 = arith.constant 0 : index
    %14 = vector.load %arg4[%c0_7, %c0_8] : memref<1x256xf32, #tpu.memory_space<vmem>>, vector<1x256xf32>
    %15 = vector.broadcast %14 : vector<1x256xf32> to vector<8x256xf32>
    %16 = arith.addf %13, %15 : vector<8x256xf32>
    %cst_9 = arith.constant 0.000000e+00 : f32
    %17 = vector.broadcast %cst_9 : f32 to vector<8x256xf32>
    %18 = arith.maximumf %16, %17 : vector<8x256xf32>
    %c0_10 = arith.constant 0 : index
    %c0_11 = arith.constant 0 : index
    %19 = vector.load %arg5[%c0_10, %c0_11] : memref<256x128xf32, #tpu.memory_space<vmem>>, vector<256x128xf32>
    %cst_12 = arith.constant dense<0.000000e+00> : vector<8x128xf32>
    %20 = tpu.matmul %18, %19, %cst_12 {dimension_numbers = #tpu.dot_dimension_numbers<[1], [0], [0], [1], [0, 0, 1, 1], [], []>} : vector<8x256xf32>, vector<256x128xf32>, vector<8x128xf32> -> vector<8x128xf32>
    %21 = arith.addf %20, %0 : vector<8x128xf32>
    %c0_13 = arith.constant 0 : index
    %c0_14 = arith.constant 0 : index
    %22 = vector.load %arg6[%c0_13, %c0_14] : memref<1x128xf32, #tpu.memory_space<vmem>>, vector<1x128xf32>
    %23 = vector.broadcast %22 : vector<1x128xf32> to vector<8x128xf32>
    %24 = arith.addf %21, %23 : vector<8x128xf32>
    %c0_15 = arith.constant 0 : index
    %c0_16 = arith.constant 0 : index
    %25 = vector.load %arg7[%c0_15, %c0_16] : memref<8x128xf32, #tpu.memory_space<vmem>>, vector<8x128xf32>
    tpu.vector_store %arg7[%c0_15, %c0_16], %24 {strides = array<i32>} : memref<8x128xf32, #tpu.memory_space<vmem>>, vector<8x128xf32>,
    return
  }
  func.func @transform_0(%arg0: i32) -> (i32, i32) {
    %c0_i32 = arith.constant 0 : i32
    %c0_i32_0 = arith.constant 0 : i32
    %c0_i32_1 = arith.constant 0 : i32
    return %c0_i32, %c0_i32_0 : i32, i32
  }
  func.func @transform_1(%arg0: i32) -> (i32, i32) {
    %c0_i32 = arith.constant 0 : i32
    %c0_i32_0 = arith.constant 0 : i32
    return %arg0, %c0_i32 : i32, i32
  }
  func.func @transform_2(%arg0: i32) -> (i32, i32) {
    %c0_i32 = arith.constant 0 : i32
    %c0_i32_0 = arith.constant 0 : i32
    %c0_i32_1 = arith.constant 0 : i32
    return %c0_i32, %c0_i32_0 : i32, i32
  }
  func.func @transform_3(%arg0: i32) -> (i32, i32) {
    %c0_i32 = arith.constant 0 : i32
    %c0_i32_0 = arith.constant 0 : i32
    %c0_i32_1 = arith.constant 0 : i32
    return %c0_i32, %c0_i32_0 : i32, i32
  }
  func.func @transform_4(%arg0: i32) -> (i32, i32) {
    %c0_i32 = arith.constant 0 : i32
    %c0_i32_0 = arith.constant 0 : i32
    %c0_i32_1 = arith.constant 0 : i32
    return %c0_i32, %c0_i32_0 : i32, i32
  }
  func.func @transform_5(%arg0: i32) -> (i32, i32) {
    %c0_i32 = arith.constant 0 : i32
    %c0_i32_0 = arith.constant 0 : i32
    %c0_i32_1 = arith.constant 0 : i32
    return %c0_i32, %c0_i32_0 : i32, i32
  }
  func.func @transform_6(%arg0: i32) -> (i32, i32) {
    %c0_i32 = arith.constant 0 : i32
    %c0_i32_0 = arith.constant 0 : i32
    return %arg0, %c0_i32 : i32, i32
  }
}

</mosaic_0001>

<llo_original>
// kernel: tpu_custom_call.1
$region0: #{tpu_custom_call.1}
  #allocation0 [shape = 'u32[]', space=smem, size = 0x4, offset = 0x4, fixed_abs, tag = 'smem constant byte address 0x4 - core index']
  #allocation1 [shape = 'u32[144,128]{1,0:T(1,128)}', space=vmem, size = 0x12000, scoped, tag = 'internal scratch']
  #allocation2 [shape = 'f32[1,1]{1,0:T(1,128)S(6)}', space=smem, size = 0x200, scoped, tag = 'scoped memory for tpu_custom_call.1']
  %s0 = inlined_call_operand.<no memory space> [shape: f32[1,1], index: 0, kind: input, shape index: {}]
  %s1 = inlined_call_operand.hbm [shape: f32[16,128], index: 1, kind: input, shape index: {}]
  %s2 = inlined_call_operand.hbm [shape: f32[128,256], index: 2, kind: input, shape index: {}]
  %s3 = inlined_call_operand.vmem [shape: f32[1,256], index: 3, kind: input, shape index: {}]
  %s4 = inlined_call_operand.hbm [shape: f32[256,128], index: 4, kind: input, shape index: {}]
  %s5 = inlined_call_operand.vmem [shape: f32[1,128], index: 5, kind: input, shape index: {}]
  %s6 = inlined_call_operand.hbm [shape: f32[16,128], index: 6, kind: output, shape index: {}]
  %s7 = sld [smem:[#allocation0]]
  $region69: #{tpu_custom_call.1} parent=0
    _
  %s9 = ssub.s32 1, %s7
  %s10 = scalar_select 0, %s9, %s7
  %11 = sst [smem:[#allocation2]] %s0
  $region1: #{tpu_custom_call.1} parent=0
    #allocation3 [shape = 'u8[8192]{0}', space=vmem, size = 0x2000, scoped, tag = 'input window, operand 1']
    #allocation4 [shape = 's32[2]{0}', space=sflag, size = 0x8, scoped, tag = 'scoped memory for tpu_custom_call.1']
    #allocation5 [shape = 's32[2]{0}', space=sflag, size = 0x8, scoped, tag = 'scoped memory for tpu_custom_call.1']
    #allocation6 [shape = 'u8[131072]{0}', space=vmem, size = 0x20000, scoped, tag = 'input window, operand 2, single buffered']
    #allocation7 [shape = 's32[1]{0}', space=sflag, size = 0x4, scoped, tag = 'scoped memory for tpu_custom_call.1']
    #allocation8 [shape = 'u8[131072]{0}', space=vmem, size = 0x20000, scoped, tag = 'input window, operand 4, single buffered']
    #allocation9 [shape = 'u8[8192]{0}', space=vmem, size = 0x2000, scoped, tag = 'output window, operand 0']
    %12 = vsyncpa [#allocation4], 0
    %s13 = scalar_lea.sflag [#allocation4], 1
    %14 = vsyncpa %s13, 0
    %15 = vsyncpa [#allocation7], 0
    %16 = vsyncpa [#allocation5], 0
    %s17 = scalar_lea.sflag [#allocation5], 1
    %18 = vsyncpa %s17, 0
    loop: start=0, step=1, limit=4
    $region2: #{tpu_custom_call.1} parent=1 // loop_pre_header
      _
    $region3: #{tpu_custom_call.1} parent=1 // loop_header
      %s20 = sphi 0, %s24
      %p21 = scmp.ge.s32.totalorder %s20, 4
      %s28 = sphi 0, %s28
      %s30 = sphi 0, %s28
      %s31 = sphi 0, %s30
      %s45 = sphi 0, %s31
      %s51 = sphi 0, %s53
      %s54 = sphi 0, %s51
      %s55 = sphi 0, %s54
      %s71 = sphi 0, %s55
      %s75 = sphi 0, %s75
      %s77 = sphi 0, %s75
      %s78 = sphi 0, %s77
      %s92 = sphi 0, %s78
      %s96 = sphi 0, %s96
      %s98 = sphi 0, %s96
      %s99 = sphi 0, %s98
      %s113 = sphi 0, %s99
      %s117 = sphi 0, %s117
      %s119 = sphi 0, %s117
      %s120 = sphi 0, %s119
      %s134 = sphi 0, %s120
      %s138 = sphi 0, %s138
      %s140 = sphi 0, %s138
      %s141 = sphi 0, %s140
      %s155 = sphi 0, %s141
      %s161 = sphi 0, %s163
      %s164 = sphi 0, %s161
      %s165 = sphi 0, %s164
      %s181 = sphi 0, %s165
    $region4: #{tpu_custom_call.1} parent=1 // loop_header_branch
      %23 = sbr.rel (%p21) target = $region8
    $region5: #{tpu_custom_call.1} parent=1 // loop_body
      %s25 = ssub.s32 %s20, 1
      %s26 = ssub.s32 %s20, 2
      %s27 = sadd.s32 %s20, 1
      %s29 = sadd.s32 %s28, 1
      %p32 = scmp.eq.s32.totalorder %s20, 1
      %p33 = scmp.ne.s32.totalorder %s28, %s30
      %p34 = scmp.eq.s32.totalorder %s20, 0
      %p35 = por %p33, %p34
      %p36 = scmp.ne.s32.totalorder %s28, %s30
      %p37 = scmp.eq.s32.totalorder %s25, 1
      %p38 = por %p36, %p37
      %p39 = scmp.ne.s32.totalorder %s30, %s31
      %p40 = scmp.eq.s32.totalorder %s25, 0
      %p41 = por %p39, %p40
      %p42 = scmp.ne.s32.totalorder %s30, %s31
      %p43 = scmp.eq.s32.totalorder %s26, 1
      %p44 = por %p42, %p43
      %p46 = scmp.ne.s32.totalorder %s31, %s45
      %p47 = scmp.eq.s32.totalorder %s26, 0
      %p48 = por %p46, %p47
      %s49 = ssub.s32 %s20, %s27
      %p50 = scmp.eq.s32.totalorder %s49, 0
      %s52 = sadd.s32 %s51, 1
      %s53 = scalar_select %p50, %s51, %s52
      %p56 = pneg %p50
      %p57 = scmp.eq.s32.totalorder %s20, 1
      %p58 = por %p56, %p57
      %p59 = scmp.ne.s32.totalorder %s51, %s54
      %p60 = scmp.eq.s32.totalorder %s20, 0
      %p61 = por %p59, %p60
      %p62 = scmp.ne.s32.totalorder %s51, %s54
      %p63 = scmp.eq.s32.totalorder %s25, 1
      %p64 = por %p62, %p63
      %p65 = scmp.ne.s32.totalorder %s54, %s55
      %p66 = scmp.eq.s32.totalorder %s25, 0
      %p67 = por %p65, %p66
      %p68 = scmp.ne.s32.totalorder %s54, %s55
      %p69 = scmp.eq.s32.totalorder %s26, 1
      %p70 = por %p68, %p69
      %p72 = scmp.ne.s32.totalorder %s55, %s71
      %p73 = scmp.eq.s32.totalorder %s26, 0
      %p74 = por %p72, %p73
      %s76 = sadd.s32 %s75, 1
      %p79 = scmp.eq.s32.totalorder %s20, 1
      %p80 = scmp.ne.s32.totalorder %s75, %s77
      %p81 = scmp.eq.s32.totalorder %s20, 0
      %p82 = por %p80, %p81
      %p83 = scmp.ne.s32.totalorder %s75, %s77
      %p84 = scmp.eq.s32.totalorder %s25, 1
      %p85 = por %p83, %p84
      %p86 = scmp.ne.s32.totalorder %s77, %s78
      %p87 = scmp.eq.s32.totalorder %s25, 0
      %p88 = por %p86, %p87
      %p89 = scmp.ne.s32.totalorder %s77, %s78
      %p90 = scmp.eq.s32.totalorder %s26, 1
      %p91 = por %p89, %p90
      %p93 = scmp.ne.s32.totalorder %s78, %s92
      %p94 = scmp.eq.s32.totalorder %s26, 0
      %p95 = por %p93, %p94
      %s97 = sadd.s32 %s96, 1
      %p100 = scmp.eq.s32.totalorder %s20, 1
      %p101 = scmp.ne.s32.totalorder %s96, %s98
      %p102 = scmp.eq.s32.totalorder %s20, 0
      %p103 = por %p101, %p102
      %p104 = scmp.ne.s32.totalorder %s96, %s98
      %p105 = scmp.eq.s32.totalorder %s25, 1
      %p106 = por %p104, %p105
      %p107 = scmp.ne.s32.totalorder %s98, %s99
      %p108 = scmp.eq.s32.totalorder %s25, 0
      %p109 = por %p107, %p108
      %p110 = scmp.ne.s32.totalorder %s98, %s99
      %p111 = scmp.eq.s32.totalorder %s26, 1
      %p112 = por %p110, %p111
      %p114 = scmp.ne.s32.totalorder %s99, %s113
      %p115 = scmp.eq.s32.totalorder %s26, 0
      %p116 = por %p114, %p115
      %s118 = sadd.s32 %s117, 1
      %p121 = scmp.eq.s32.totalorder %s20, 1
      %p122 = scmp.ne.s32.totalorder %s117, %s119
      %p123 = scmp.eq.s32.totalorder %s20, 0
      %p124 = por %p122, %p123
      %p125 = scmp.ne.s32.totalorder %s117, %s119
      %p126 = scmp.eq.s32.totalorder %s25, 1
      %p127 = por %p125, %p126
      %p128 = scmp.ne.s32.totalorder %s119, %s120
      %p129 = scmp.eq.s32.totalorder %s25, 0
      %p130 = por %p128, %p129
      %p131 = scmp.ne.s32.totalorder %s119, %s120
      %p132 = scmp.eq.s32.totalorder %s26, 1
      %p133 = por %p131, %p132
      %p135 = scmp.ne.s32.totalorder %s120, %s134
      %p136 = scmp.eq.s32.totalorder %s26, 0
      %p137 = por %p135, %p136
      %s139 = sadd.s32 %s138, 1
      %p142 = scmp.eq.s32.totalorder %s20, 1
      %p143 = scmp.ne.s32.totalorder %s138, %s140
      %p144 = scmp.eq.s32.totalorder %s20, 0
      %p145 = por %p143, %p144
      %p146 = scmp.ne.s32.totalorder %s138, %s140
      %p147 = scmp.eq.s32.totalorder %s25, 1
      %p148 = por %p146, %p147
      %p149 = scmp.ne.s32.totalorder %s140, %s141
      %p150 = scmp.eq.s32.totalorder %s25, 0
      %p151 = por %p149, %p150
      %p152 = scmp.ne.s32.totalorder %s140, %s141
      %p153 = scmp.eq.s32.totalorder %s26, 1
      %p154 = por %p152, %p153
      %p156 = scmp.ne.s32.totalorder %s141, %s155
      %p157 = scmp.eq.s32.totalorder %s26, 0
      %p158 = por %p156, %p157
      %s159 = ssub.s32 %s20, %s27
      %p160 = scmp.eq.s32.totalorder %s159, 0
      %s162 = sadd.s32 %s161, 1
      %s163 = scalar_select %p160, %s161, %s162
      %p166 = pneg %p160
      %p167 = scmp.eq.s32.totalorder %s20, 1
      %p168 = por %p166, %p167
      %p169 = scmp.ne.s32.totalorder %s161, %s164
      %p170 = scmp.eq.s32.totalorder %s20, 0
      %p171 = por %p169, %p170
      %p172 = scmp.ne.s32.totalorder %s161, %s164
      %p173 = scmp.eq.s32.totalorder %s25, 1
      %p174 = por %p172, %p173
      %p175 = scmp.ne.s32.totalorder %s164, %s165
      %p176 = scmp.eq.s32.totalorder %s25, 0
      %p177 = por %p175, %p176
      %p178 = scmp.ne.s32.totalorder %s164, %s165
      %p179 = scmp.eq.s32.totalorder %s26, 1
      %p180 = por %p178, %p179
      %p182 = scmp.ne.s32.totalorder %s165, %s181
      %p183 = scmp.eq.s32.totalorder %s26, 0
      %p184 = por %p182, %p183
      %p185 = scmp.le.s32.totalorder 1, %s20
      %p186 = scmp.lt.s32.totalorder %s20, 3
      %p187 = pnand %p185, %p186
      %p188 = pneg %p187
      // Predicated region
      $region9: #{tpu_custom_call.1} parent=5 // pred_check
        _
      $region10: #{tpu_custom_call.1} parent=5 // pred_check_branch
        %190 = sbr.rel (%p187) target = $region12
      $region11: #{tpu_custom_call.1} parent=5 // pred_region
        %s191 = ssub.s32 %s20, 1
        // Predicated region
        $region13: #{tpu_custom_call.1} parent=11 // pred_check
          %p192 = pneg %p41
        $region14: #{tpu_custom_call.1} parent=11 // pred_check_branch
          %194 = sbr.rel (%p192) target = $region16
        $region15: #{tpu_custom_call.1} parent=11 // pred_region
          _
        $region16: #{tpu_custom_call.1} parent=11 // pred_fallthru
          _
        // Predicated region
        $region17: #{tpu_custom_call.1} parent=11 // pred_check
          %p195 = pneg %p88
        $region18: #{tpu_custom_call.1} parent=11 // pred_check_branch
          %197 = sbr.rel (%p195) target = $region20
        $region19: #{tpu_custom_call.1} parent=11 // pred_region
          %s199 = ssub.s32 4096, 4096
          %200 = vsyncadd [#allocation7], %s199
          %s201 = sshll.u32 [#allocation6], 4
          %s202 = int_to_ptr.vmem [resolvable:$true] %s201
          %207 = dma.hbm_to_vmem [thread:$0]  %s2, 4096, %s202, [#allocation7], 256, 256, 16
        $region20: #{tpu_custom_call.1} parent=11 // pred_fallthru
          _
        // Predicated region
        $region21: #{tpu_custom_call.1} parent=11 // pred_check
          %p208 = pneg %p109
        $region22: #{tpu_custom_call.1} parent=11 // pred_check_branch
          %210 = sbr.rel (%p208) target = $region24
        $region23: #{tpu_custom_call.1} parent=11 // pred_region
          _
        $region24: #{tpu_custom_call.1} parent=11 // pred_fallthru
          _
        // Predicated region
        $region25: #{tpu_custom_call.1} parent=11 // pred_check
          %p211 = pneg %p130
        $region26: #{tpu_custom_call.1} parent=11 // pred_check_branch
          %213 = sbr.rel (%p211) target = $region28
        $region27: #{tpu_custom_call.1} parent=11 // pred_region
          %s215 = ssub.s32 4096, 4096
          %216 = vsyncadd [#allocation7], %s215
          %s217 = sshll.u32 [#allocation8], 4
          %s218 = int_to_ptr.vmem [resolvable:$true] %s217
          %223 = dma.hbm_to_vmem [thread:$0]  %s4, 4096, %s218, [#allocation7], 128, 128, 8
        $region28: #{tpu_custom_call.1} parent=11 // pred_fallthru
          _
        // Predicated region
        $region29: #{tpu_custom_call.1} parent=11 // pred_check
          %p224 = pneg %p151
        $region30: #{tpu_custom_call.1} parent=11 // pred_check_branch
          %226 = sbr.rel (%p224) target = $region32
        $region31: #{tpu_custom_call.1} parent=11 // pred_region
          _
        $region32: #{tpu_custom_call.1} parent=11 // pred_fallthru
          _
      $region12: #{tpu_custom_call.1} parent=5 // pred_fallthru
        _
      %p227 = scmp.lt.s32.totalorder %s20, 2
      // Predicated region
      $region33: #{tpu_custom_call.1} parent=5 // pred_check
        %p228 = pneg %p227
      $region34: #{tpu_custom_call.1} parent=5 // pred_check_branch
        %230 = sbr.rel (%p228) target = $region36
      $region35: #{tpu_custom_call.1} parent=5 // pred_region
        // Predicated region
        $region37: #{tpu_custom_call.1} parent=35 // pred_check
          %p231 = pneg %p61
        $region38: #{tpu_custom_call.1} parent=35 // pred_check_branch
          %233 = sbr.rel (%p231) target = $region40
        $region39: #{tpu_custom_call.1} parent=35 // pred_region
          %s234 = sand.u32 %s51, 1
          %s235 = scalar_lea.sflag [#allocation4], %s234
          %s236 = sand.u32 %s51, 1
          %s237 = smul.addr %s236, 8
          %s238 = scalar_lea.vmem [#allocation3], %s237
          %s240 = ssub.s32 128, 128
          %241 = vsyncadd %s235, %s240
          %s242 = smul.addr %s20, 128
          %s243 = scalar_lea.hbm %s1, %s242
          %s245 = sshll.u32 %s238, 4
          %s246 = int_to_ptr.vmem [resolvable:$true] %s245
          %248 = dma.hbm_to_vmem [thread:$0]  %s243, 128, %s246, %s235
        $region40: #{tpu_custom_call.1} parent=35 // pred_fallthru
          _
      $region36: #{tpu_custom_call.1} parent=5 // pred_fallthru
        _
      %p249 = scmp.le.s32.totalorder 1, %s20
      %p250 = scmp.lt.s32.totalorder %s20, 3
      %p251 = pnand %p249, %p250
      %p252 = pneg %p251
      // Predicated region
      $region41: #{tpu_custom_call.1} parent=5 // pred_check
        _
      $region42: #{tpu_custom_call.1} parent=5 // pred_check_branch
        %254 = sbr.rel (%p251) target = $region44
      $region43: #{tpu_custom_call.1} parent=5 // pred_region
        %s255 = ssub.s32 %s20, 1
        %s256 = sand.u32 %s54, 1
        %s257 = scalar_lea.sflag [#allocation4], %s256
        %s258 = sand.u32 %s54, 1
        %s259 = smul.addr %s258, 8
        %s260 = scalar_lea.vmem [#allocation3], %s259
        // Predicated region
        $region45: #{tpu_custom_call.1} parent=43 // pred_check
          %p261 = pneg %p67
        $region46: #{tpu_custom_call.1} parent=43 // pred_check_branch
          %263 = sbr.rel (%p261) target = $region48
        $region47: #{tpu_custom_call.1} parent=43 // pred_region
          %264 = dma.done %s257, 128
        $region48: #{tpu_custom_call.1} parent=43 // pred_fallthru
          _
        // Predicated region
        $region49: #{tpu_custom_call.1} parent=43 // pred_check
          %p265 = pneg %p88
        $region50: #{tpu_custom_call.1} parent=43 // pred_check_branch
          %267 = sbr.rel (%p265) target = $region52
        $region51: #{tpu_custom_call.1} parent=43 // pred_region
          %268 = dma.done [#allocation7], 4096
        $region52: #{tpu_custom_call.1} parent=43 // pred_fallthru
          _
        // Predicated region
        $region53: #{tpu_custom_call.1} parent=43 // pred_check
          %p269 = pneg %p130
        $region54: #{tpu_custom_call.1} parent=43 // pred_check_branch
          %271 = sbr.rel (%p269) target = $region56
        $region55: #{tpu_custom_call.1} parent=43 // pred_region
          %272 = dma.done [#allocation7], 4096
        $region56: #{tpu_custom_call.1} parent=43 // pred_fallthru
          _
        %p273 = pneg %p41
        %p274 = pneg %p38
        %s275 = sand.u32 %s54, 1
        %s276 = scalar_lea.sflag [#allocation4], %s275
        %s277 = sand.u32 %s54, 1
        %s278 = smul.addr %s277, 8
        %s279 = scalar_lea.vmem [#allocation3], %s278
        %p280 = pneg %p67
        %p281 = pneg %p64
        %p282 = pneg %p88
        %p283 = pneg %p85
        %p284 = pneg %p109
        %p285 = pneg %p106
        %p286 = pneg %p130
        %p287 = pneg %p127
        %p288 = pneg %p151
        %p289 = pneg %p148
        %p290 = pneg %p177
        %p291 = pneg %p174
        %s292 = sand.u32 %s164, 1
        %s293 = scalar_lea.sflag [#allocation5], %s292
        %s294 = sand.u32 %s164, 1
        %s295 = smul.addr %s294, 8
        %s296 = scalar_lea.vmem [#allocation9], %s295
        %v297 = vld [vmem:[%s260] sm:$0xff]
        %s298 = sld [smem:[#allocation2]]
        %v299 = vmul.f32 %v297, %v297
        %300 = vadd.xlane.f32.xlu0 %v299
        %v301 = vpop.xlane.xlu0 %300
        %v302 = vmax.f32 %v301, 1e-10
        %v303 = vrsqrt.pop %v302
        %v304 = vstv %s298
        %v305 = vmul.f32 %v304, %v303
        %v306 = vmul.f32 %v297, %v305
        %v307 = vld [vmem:[#allocation6] sm:$0xff]
        %v308 = vld [vmem:[#allocation6 + $0x8] sm:$0xff]
        %v309 = vld [vmem:[#allocation6 + $0x10] sm:$0xff]
        %v310 = vld [vmem:[#allocation6 + $0x18] sm:$0xff]
        %v311 = vld [vmem:[#allocation6 + $0x20] sm:$0xff]
        %v312 = vld [vmem:[#allocation6 + $0x28] sm:$0xff]
        %v313 = vld [vmem:[#allocation6 + $0x30] sm:$0xff]
        %v314 = vld [vmem:[#allocation6 + $0x38] sm:$0xff]
        %v315 = vld [vmem:[#allocation6 + $0x40] sm:$0xff]
        %v316 = vld [vmem:[#allocation6 + $0x48] sm:$0xff]
        %v317 = vld [vmem:[#allocation6 + $0x50] sm:$0xff]
        %v318 = vld [vmem:[#allocation6 + $0x58] sm:$0xff]
        %v319 = vld [vmem:[#allocation6 + $0x60] sm:$0xff]
        %v320 = vld [vmem:[#allocation6 + $0x68] sm:$0xff]
        %v321 = vld [vmem:[#allocation6 + $0x70] sm:$0xff]
        %v322 = vld [vmem:[#allocation6 + $0x78] sm:$0xff]
        %v323 = vld [vmem:[#allocation6 + $0x80] sm:$0xff]
        %v324 = vld [vmem:[#allocation6 + $0x88] sm:$0xff]
        %v325 = vld [vmem:[#allocation6 + $0x90] sm:$0xff]
        %v326 = vld [vmem:[#allocation6 + $0x98] sm:$0xff]
        %v327 = vld [vmem:[#allocation6 + $0xa0] sm:$0xff]
        %v328 = vld [vmem:[#allocation6 + $0xa8] sm:$0xff]
        %v329 = vld [vmem:[#allocation6 + $0xb0] sm:$0xff]
        %v330 = vld [vmem:[#allocation6 + $0xb8] sm:$0xff]
        %v331 = vld [vmem:[#allocation6 + $0xc0] sm:$0xff]
        %v332 = vld [vmem:[#allocation6 + $0xc8] sm:$0xff]
        %v333 = vld [vmem:[#allocation6 + $0xd0] sm:$0xff]
        %v334 = vld [vmem:[#allocation6 + $0xd8] sm:$0xff]
        %v335 = vld [vmem:[#allocation6 + $0xe0] sm:$0xff]
        %v336 = vld [vmem:[#allocation6 + $0xe8] sm:$0xff]
        %v337 = vld [vmem:[#allocation6 + $0xf0] sm:$0xff]
        %v338 = vld [vmem:[#allocation6 + $0xf8] sm:$0xff]
        %v339 = vld [vmem:[%s3] sm:$0x3]
        %v341 = vlaneseq
        %v342 = vshrl.u32 %v341, 7
        %v343 = vsub.s32 0, %v342
        %v344 = vrot.slane %v339, %v343
        %v345 = vlaneseq
        %v346 = vshrl.u32 %v345, 7
        %v347 = vsub.s32 1, %v346
        %v348 = vrot.slane %v339, %v347
        %351 = vmatprep.subr.mxu0 %v338
        %352 = vmatpush1.msra.mxu0 %v337
        %353 = vmatprep.subr.mxu0 %v336
        %354 = vmatpush1.msra.mxu0 %v335
        %355 = vmatprep.subr.mxu0 %v334
        %356 = vmatpush1.msra.mxu0 %v333
        %357 = vmatprep.subr.mxu0 %v332
        %358 = vmatpush1.msra.mxu0 %v331
        %359 = vmatprep.subr.mxu0 %v330
        %360 = vmatpush1.msra.mxu0 %v329
        %361 = vmatprep.subr.mxu0 %v328
        %362 = vmatpush1.msra.mxu0 %v327
        %363 = vmatprep.subr.mxu0 %v326
        %364 = vmatpush1.msra.mxu0 %v325
        %365 = vmatprep.subr.mxu0 %v324
        %366 = vmatpush1.msra.mxu0 %v323
        %367 = vmatprep.subr.mxu0 %v322
        %368 = vmatpush1.msra.mxu0 %v321
        %369 = vmatprep.subr.mxu0 %v320
        %370 = vmatpush1.msra.mxu0 %v319
        %371 = vmatprep.subr.mxu0 %v318
        %372 = vmatpush1.msra.mxu0 %v317
        %373 = vmatprep.subr.mxu0 %v316
        %374 = vmatpush1.msra.mxu0 %v315
        %375 = vmatprep.subr.mxu0 %v314
        %376 = vmatpush1.msra.mxu0 %v313
        %377 = vmatprep.subr.mxu0 %v312
        %378 = vmatpush1.msra.mxu0 %v311
        %379 = vmatprep.subr.mxu0 %v310
        %380 = vmatpush1.msra.mxu0 %v309
        %381 = vmatprep.subr.mxu0 %v308
        %382 = vmatpush1.msra.mxu0 %v307
        %383 = vmatprep.subr.mxu0 0.0
        %384 = vmatpush2.msra.mxu0 0.0
        %385 = vmatprep.subr.mxu0 0.0
        %386 = vmatpush2.msra.mxu0 0.0
        %387 = vmatprep.subr.mxu0 0.0
        %388 = vmatpush2.msra.mxu0 0.0
        %389 = vmatprep.subr.mxu0 0.0
        %390 = vmatpush2.msra.mxu0 0.0
        %391 = vmatprep.subr.mxu0 0.0
        %392 = vmatpush2.msra.mxu0 0.0
        %393 = vmatprep.subr.mxu0 0.0
        %394 = vmatpush2.msra.mxu0 0.0
        %395 = vmatprep.subr.mxu0 0.0
        %396 = vmatpush2.msra.mxu0 0.0
        %397 = vmatprep.subr.mxu0 0.0
        %398 = vmatpush2.msra.mxu0 0.0
        %399 = vmatprep.subr.mxu0 0.0
        %400 = vmatpush2.msra.mxu0 0.0
        %401 = vmatprep.subr.mxu0 0.0
        %402 = vmatpush2.msra.mxu0 0.0
        %403 = vmatprep.subr.mxu0 0.0
        %404 = vmatpush2.msra.mxu0 0.0
        %405 = vmatprep.subr.mxu0 0.0
        %406 = vmatpush2.msra.mxu0 0.0
        %407 = vmatprep.subr.mxu0 0.0
        %408 = vmatpush2.msra.mxu0 0.0
        %409 = vmatprep.subr.mxu0 0.0
        %410 = vmatpush2.msra.mxu0 0.0
        %411 = vmatprep.subr.mxu0 0.0
        %412 = vmatpush2.msra.mxu0 0.0
        %413 = vmatprep.subr.mxu0 0.0
        %414 = vmatpush2.msra.mxu0 0.0
        %415 = vmatprep.mubr.f32.mxu0 0.0
        %416 = vmatmul.mubr.f32.gmra.mxu0 %v306
        %v417 = vpop.f32.mrf.mxu0
        %v418 = vadd.f32 %v344, %v417
        %v419 = vpop.f32.mrf.mxu0
        %v420 = vadd.f32 %v348, %v419
        %421 = vdwg.mxu0
        %v422 = vmax.f32 %v418, 0.0
        %v423 = vmax.f32 %v420, 0.0
        %v424 = vld [vmem:[#allocation8] sm:$0xff]
        %v425 = vld [vmem:[#allocation8 + $0x8] sm:$0xff]
        %v426 = vld [vmem:[#allocation8 + $0x10] sm:$0xff]
        %v427 = vld [vmem:[#allocation8 + $0x18] sm:$0xff]
        %v428 = vld [vmem:[#allocation8 + $0x20] sm:$0xff]
        %v429 = vld [vmem:[#allocation8 + $0x28] sm:$0xff]
        %v430 = vld [vmem:[#allocation8 + $0x30] sm:$0xff]
        %v431 = vld [vmem:[#allocation8 + $0x38] sm:$0xff]
        %v432 = vld [vmem:[#allocation8 + $0x40] sm:$0xff]
        %v433 = vld [vmem:[#allocation8 + $0x48] sm:$0xff]
        %v434 = vld [vmem:[#allocation8 + $0x50] sm:$0xff]
        %v435 = vld [vmem:[#allocation8 + $0x58] sm:$0xff]
        %v436 = vld [vmem:[#allocation8 + $0x60] sm:$0xff]
        %v437 = vld [vmem:[#allocation8 + $0x68] sm:$0xff]
        %v438 = vld [vmem:[#allocation8 + $0x70] sm:$0xff]
        %v439 = vld [vmem:[#allocation8 + $0x78] sm:$0xff]
        %v440 = vld [vmem:[#allocation8 + $0x80] sm:$0xff]
        %v441 = vld [vmem:[#allocation8 + $0x88] sm:$0xff]
        %v442 = vld [vmem:[#allocation8 + $0x90] sm:$0xff]
        %v443 = vld [vmem:[#allocation8 + $0x98] sm:$0xff]
        %v444 = vld [vmem:[#allocation8 + $0xa0] sm:$0xff]
        %v445 = vld [vmem:[#allocation8 + $0xa8] sm:$0xff]
        %v446 = vld [vmem:[#allocation8 + $0xb0] sm:$0xff]
        %v447 = vld [vmem:[#allocation8 + $0xb8] sm:$0xff]
        %v448 = vld [vmem:[#allocation8 + $0xc0] sm:$0xff]
        %v449 = vld [vmem:[#allocation8 + $0xc8] sm:$0xff]
        %v450 = vld [vmem:[#allocation8 + $0xd0] sm:$0xff]
        %v451 = vld [vmem:[#allocation8 + $0xd8] sm:$0xff]
        %v452 = vld [vmem:[#allocation8 + $0xe0] sm:$0xff]
        %v453 = vld [vmem:[#allocation8 + $0xe8] sm:$0xff]
        %v454 = vld [vmem:[#allocation8 + $0xf0] sm:$0xff]
        %v455 = vld [vmem:[#allocation8 + $0xf8] sm:$0xff]
        %456 = vmatprep.subr.mxu0 0.0
        %457 = vmatpush1.msra.mxu0 %v439
        %458 = vmatprep.subr.mxu0 0.0
        %459 = vmatpush1.msra.mxu0 %v438
        %460 = vmatprep.subr.mxu0 0.0
        %461 = vmatpush1.msra.mxu0 %v437
        %462 = vmatprep.subr.mxu0 0.0
        %463 = vmatpush1.msra.mxu0 %v436
        %464 = vmatprep.subr.mxu0 0.0
        %465 = vmatpush1.msra.mxu0 %v435
        %466 = vmatprep.subr.mxu0 0.0
        %467 = vmatpush1.msra.mxu0 %v434
        %468 = vmatprep.subr.mxu0 0.0
        %469 = vmatpush1.msra.mxu0 %v433
        %470 = vmatprep.subr.mxu0 0.0
        %471 = vmatpush1.msra.mxu0 %v432
        %472 = vmatprep.subr.mxu0 0.0
        %473 = vmatpush1.msra.mxu0 %v431
        %474 = vmatprep.subr.mxu0 0.0
        %475 = vmatpush1.msra.mxu0 %v430
        %476 = vmatprep.subr.mxu0 0.0
        %477 = vmatpush1.msra.mxu0 %v429
        %478 = vmatprep.subr.mxu0 0.0
        %479 = vmatpush1.msra.mxu0 %v428
        %480 = vmatprep.subr.mxu0 0.0
        %481 = vmatpush1.msra.mxu0 %v427
        %482 = vmatprep.subr.mxu0 0.0
        %483 = vmatpush1.msra.mxu0 %v426
        %484 = vmatprep.subr.mxu0 0.0
        %485 = vmatpush1.msra.mxu0 %v425
        %486 = vmatprep.subr.mxu0 0.0
        %487 = vmatpush1.msra.mxu0 %v424
        %488 = vmatprep.subr.mxu0 0.0
        %489 = vmatpush2.msra.mxu0 %v455
        %490 = vmatprep.subr.mxu0 0.0
        %491 = vmatpush2.msra.mxu0 %v454
        %492 = vmatprep.subr.mxu0 0.0
        %493 = vmatpush2.msra.mxu0 %v453
        %494 = vmatprep.subr.mxu0 0.0
        %495 = vmatpush2.msra.mxu0 %v452
        %496 = vmatprep.subr.mxu0 0.0
        %497 = vmatpush2.msra.mxu0 %v451
        %498 = vmatprep.subr.mxu0 0.0
        %499 = vmatpush2.msra.mxu0 %v450
        %500 = vmatprep.subr.mxu0 0.0
        %501 = vmatpush2.msra.mxu0 %v449
        %502 = vmatprep.subr.mxu0 0.0
        %503 = vmatpush2.msra.mxu0 %v448
        %504 = vmatprep.subr.mxu0 0.0
        %505 = vmatpush2.msra.mxu0 %v447
        %506 = vmatprep.subr.mxu0 0.0
        %507 = vmatpush2.msra.mxu0 %v446
        %508 = vmatprep.subr.mxu0 0.0
        %509 = vmatpush2.msra.mxu0 %v445
        %510 = vmatprep.subr.mxu0 0.0
        %511 = vmatpush2.msra.mxu0 %v444
        %512 = vmatprep.subr.mxu0 0.0
        %513 = vmatpush2.msra.mxu0 %v443
        %514 = vmatprep.subr.mxu0 0.0
        %515 = vmatpush2.msra.mxu0 %v442
        %516 = vmatprep.subr.mxu0 0.0
        %517 = vmatpush2.msra.mxu0 %v441
        %518 = vmatprep.subr.mxu0 0.0
        %519 = vmatpush2.msra.mxu0 %v440
        %520 = vmatprep.mubr.f32.mxu0 %v423
        %521 = vmatmul.mubr.f32.gmra.mxu0 %v422
        %v522 = vpop.f32.mrf.mxu0
        %v523 = vadd.f32 %v297, %v522
        %v524 = vpop.f32.mrf.mxu0
        %525 = vdwg.mxu0
        %v526 = vld [vmem:[%s5] sm:$0x1]
        %v528 = vlaneseq
        %v529 = vshrl.u32 %v528, 7
        %v530 = vsub.s32 0, %v529
        %v531 = vrot.slane %v526, %v530
        %v533 = vadd.f32 %v523, %v531
        %534 = vst [vmem:[%s296] sm:$0xff] %v533
        %s535 = sand.u32 %s164, 1
        %s536 = scalar_lea.sflag [#allocation5], %s535
        %s537 = sand.u32 %s164, 1
        %s538 = smul.addr %s537, 8
        %s539 = scalar_lea.vmem [#allocation9], %s538
        // Predicated region
        $region57: #{tpu_custom_call.1} parent=43 // pred_check
          %p540 = pneg %p174
        $region58: #{tpu_custom_call.1} parent=43 // pred_check_branch
          %542 = sbr.rel (%p540) target = $region60
        $region59: #{tpu_custom_call.1} parent=43 // pred_region
          %s544 = ssub.s32 128, 128
          %545 = vsyncadd %s536, %s544
          %s546 = smul.addr %s25, 128
          %s547 = scalar_lea.hbm %s6, %s546
          %s549 = sshll.u32 %s539, 4
          %s550 = int_to_ptr.vmem [resolvable:$true] %s549
          %552 = dma.vmem_to_hbm [thread:$0]  %s550, 128, %s547, %s536
        $region60: #{tpu_custom_call.1} parent=43 // pred_fallthru
          _
      $region44: #{tpu_custom_call.1} parent=5 // pred_fallthru
        _
      %p553 = scmp.le.s32.totalorder 2, %s20
      // Predicated region
      $region61: #{tpu_custom_call.1} parent=5 // pred_check
        %p554 = pneg %p553
      $region62: #{tpu_custom_call.1} parent=5 // pred_check_branch
        %556 = sbr.rel (%p554) target = $region64
      $region63: #{tpu_custom_call.1} parent=5 // pred_region
        %s557 = ssub.s32 %s20, 2
        // Predicated region
        $region65: #{tpu_custom_call.1} parent=63 // pred_check
          %p558 = pneg %p180
        $region66: #{tpu_custom_call.1} parent=63 // pred_check_branch
          %560 = sbr.rel (%p558) target = $region68
        $region67: #{tpu_custom_call.1} parent=63 // pred_region
          %s561 = sand.u32 %s165, 1
          %s562 = scalar_lea.sflag [#allocation5], %s561
          %s563 = sand.u32 %s165, 1
          %s564 = smul.addr %s563, 8
          %s565 = scalar_lea.vmem [#allocation9], %s564
          %566 = dma.done %s562, 128
        $region68: #{tpu_custom_call.1} parent=63 // pred_fallthru
          _
      $region64: #{tpu_custom_call.1} parent=5 // pred_fallthru
        _
    $region6: #{tpu_custom_call.1} parent=1 // loop_footer
      %s24 = sadd.s32 1, %s20
    $region7: #{tpu_custom_call.1} parent=1 // loop_footer_branch
      %19 = sbr.rel target = $region3
    $region8: #{tpu_custom_call.1} parent=1 // loop_exit
      _
    %567 = vsyncpa [#allocation4], 1
    %s568 = scalar_lea.sflag [#allocation4], 1
    %569 = vsyncpa %s568, 1
    %570 = vsyncpa [#allocation7], 1
    %571 = vsyncpa [#allocation5], 1
    %s572 = scalar_lea.sflag [#allocation5], 1
    %573 = vsyncpa %s572, 1

</llo_original>
